<compile_context>
chip_gen: v6e
topology: v6e:2x2x1
jax: 0.10.0
libtpu: 0.0.40
codegen_flags: <defaults>
</compile_context>

<pallas_src>
import jax
import jax.numpy as jnp
from jax import lax
from jax.experimental import pallas as pl
from jax.experimental.pallas import tpu as pltpu


# ------------------------------ fused kernel ------------------------------- #

def _fused_ogcn_kernel(a0_ref, ahr_ref, ahi_ref, x_ref,
                       w0_ref, wblk_ref, wout_ref, bout_ref,
                       out_ref,
                       x_sc):
    """Entire OrthogonalGCN forward on VMEM-resident operands.

    a0:   real normalized adjacency            [N, N]       (bf16)
    ahr/ahi: Hermitian adjacency real/imag     [N, N]       (bf16)
    x:    real node features                   [N, Fin]     (bf16)
    w0:   layer-0 weight, [w0r | w0i]          [Fin, 2H]    (bf16)
    wblk: per-layer real-embedded block weight [L, 2H, 2H]  (bf16)
          wblk[l] = [[wr, wi], [-wi, wr]]
    wout/bout: output Linear (lane-padded)     [H, Op]/[1, Op]
    x_sc: activation scratch [xr | xi]         [N, 2H]      (bf16, resident)
    """
    f32 = jnp.float32
    bf16 = jnp.bfloat16
    hidden = wblk_ref.shape[1] // 2
    num_layers = wblk_ref.shape[0]           # static

    # ---- layer 0: real X, real Â -> 2 dots total --------------------------
    t0 = jnp.dot(x_ref[...], w0_ref[...], preferred_element_type=f32)
    x_sc[...] = jnp.dot(a0_ref[...], t0.astype(bf16),
                        preferred_element_type=f32).astype(bf16)

    ahr = ahr_ref[...]
    ahi = ahi_ref[...]

    # ---- Hermitian layers 1 .. L: real-embedded transform + 2-dot prop ----
    def layer_body(l, carry):
        x_cat = x_sc[...]                                        # [N, 2H] bf16
        # T = X @ W  (complex) as one real-embedded dot
        t_cat = jnp.dot(x_cat, wblk_ref[l],
                        preferred_element_type=f32).astype(bf16)  # [tr | ti]
        # X' = Â_h @ T: two N-deep dots of doubled output width
        p = jnp.dot(ahr, t_cat, preferred_element_type=f32)  # [Ar@tr | Ar@ti]
        q = jnp.dot(ahi, t_cat, preferred_element_type=f32)  # [Ai@tr | Ai@ti]
        xr_new = p[:, :hidden] - q[:, hidden:]                # f32 VPU
        xi_new = p[:, hidden:] + q[:, :hidden]                # f32 VPU
        x_sc[...] = jnp.concatenate([xr_new, xi_new], axis=-1).astype(bf16)
        return carry

    lax.fori_loop(0, num_layers, layer_body, 0, unroll=True)

    # ---- fused output head on the real part (lane-dense, padded cols) -----
    xr_last = x_sc[...][:, :hidden]                            # bf16 [N, H]
    out_ref[...] = (jnp.dot(xr_last, wout_ref[...],
                            preferred_element_type=f32)
                    + bout_ref[...]).astype(out_ref.dtype)


# ------------------------------ wrapper ------------------------------------ #

def _vmem_limit_bytes():
    """~100 MiB on 128-MiB chips (v5e/v6e), ~56 MiB on v7x, with headroom."""
    cap = 128 * 1024 * 1024
    try:
        cap = int(pltpu.get_tpu_info().vmem_capacity_bytes)
    except Exception:
        pass
    return int(max(32 * 1024 * 1024,
                   min(cap - 8 * 1024 * 1024, 100 * 1024 * 1024)))


def orthogonal_gcn_forward(params, a_norm, a_herm_r, a_herm_i, x):
    """Single pallas_call for the whole OrthogonalGCN forward (inference)."""
    n = x.shape[0]
    hidden = params["w0_r"].shape[1]
    out_dim = params["w_out"].shape[1]
    num_layers = params["wh_r"].shape[0]
    assert num_layers >= 1, "model has at least one Hermitian conv layer"

    bf16 = jnp.bfloat16
    f32 = jnp.float32
    out_pad = ((out_dim + 127) // 128) * 128   # lane-dense output head

    # Layer-0 weight: [w0r | w0i]  (Fin, 2H)
    w0_cat = jnp.concatenate([params["w0_r"], params["w0_i"]],
                             axis=1).astype(bf16)
    # Hermitian weights in real-embedded block form [[wr, wi], [-wi, wr]].
    top = jnp.concatenate([params["wh_r"], params["wh_i"]], axis=2)
    bot = jnp.concatenate([-params["wh_i"], params["wh_r"]], axis=2)
    w_blk = jnp.concatenate([top, bot], axis=1).astype(bf16)   # [L, 2H, 2H]
    # Lane-dense (128-multiple) output head.
    w_out_p = jnp.pad(params["w_out"],
                      ((0, 0), (0, out_pad - out_dim))).astype(bf16)
    b_out_p = jnp.pad(params["b_out"],
                      (0, out_pad - out_dim)).reshape(1, out_pad).astype(f32)

    args = (
        a_norm.astype(bf16),
        a_herm_r.astype(bf16),
        a_herm_i.astype(bf16),
        x.astype(bf16),
        w0_cat,
        w_blk,
        w_out_p,
        b_out_p,
    )

    vmem_spec = pl.BlockSpec(memory_space=pltpu.MemorySpace.VMEM)
    out_padded = pl.pallas_call(
        _fused_ogcn_kernel,
        out_shape=jax.ShapeDtypeStruct((n, out_pad), f32),
        in_specs=[vmem_spec] * len(args),
        out_specs=vmem_spec,
        scratch_shapes=[pltpu.VMEM((n, 2 * hidden), bf16)],
        compiler_params=pltpu.CompilerParams(
            vmem_limit_bytes=_vmem_limit_bytes()),
    )(*args)
    return out_padded[:, :out_dim]


# ------------------------------ test harness ------------------------------- #

def build_adjacency(key, n, q=0.25):
    """Dense symmetric-normalized adjacency + Hermitian (magnetic) variant."""
    a_dir = (jax.random.uniform(key, (n, n)) < 0.3).astype(jnp.float32)
    a_dir = a_dir * (1.0 - jnp.eye(n, dtype=jnp.float32))
    a_sym = jnp.clip(a_dir + a_dir.T, 0.0, 1.0) + jnp.eye(n, dtype=jnp.float32)
    deg = a_sym.sum(axis=1)
    dinv = 1.0 / jnp.sqrt(deg)
    a_norm = dinv[:, None] * a_sym * dinv[None, :]
    theta = 2.0 * jnp.pi * q * (a_dir - a_dir.T)
    return a_norm, a_norm * jnp.cos(theta), a_norm * jnp.sin(theta)


def init_params(key, input_dim, hidden_dim, output_dim, num_layers):
    ks = jax.random.split(key, 6)
    scale_in = 1.0 / jnp.sqrt(jnp.float32(input_dim))
    scale_h = 1.0 / jnp.sqrt(jnp.float32(hidden_dim))
    return {
        "w0_r": scale_in * jax.random.normal(ks[0], (input_dim, hidden_dim), jnp.float32),
        "w0_i": scale_in * jax.random.normal(ks[1], (input_dim, hidden_dim), jnp.float32),
        "wh_r": scale_h * jax.random.normal(ks[2], (num_layers, hidden_dim, hidden_dim), jnp.float32),
        "wh_i": scale_h * jax.random.normal(ks[3], (num_layers, hidden_dim, hidden_dim), jnp.float32),
        "w_out": scale_h * jax.random.normal(ks[4], (hidden_dim, output_dim), jnp.float32),
        "b_out": 0.01 * jax.random.normal(ks[5], (output_dim,), jnp.float32),
    }


def reference_forward(params, a_norm, a_herm_r, a_herm_i, x):
    """Pure-JAX complex64 reference, fed the SAME bf16-cast inputs the kernel
    consumes (so the comparison isolates kernel math, not bf16 quantization)."""
    cast = lambda a: a.astype(jnp.bfloat16).astype(jnp.float32)
    num_layers = params["wh_r"].shape[0]
    xc = cast(x).astype(jnp.complex64)
    a0 = cast(a_norm).astype(jnp.complex64)
    ah = (cast(a_herm_r) + 1j * cast(a_herm_i)).astype(jnp.complex64)
    w0 = (cast(params["w0_r"]) + 1j * cast(params["w0_i"])).astype(jnp.complex64)
    xc = a0 @ (xc @ w0)
    for l in range(num_layers):
        wl = (cast(params["wh_r"][l]) + 1j * cast(params["wh_i"][l])).astype(jnp.complex64)
        xc = ah @ (xc @ wl)
    return jnp.real(xc) @ cast(params["w_out"]) + params["b_out"]


if __name__ == "__main__":
    # Small shapes implied by the module: N nodes, input_dim -> hidden_dim -> output_dim.
    N, INPUT_DIM, HIDDEN_DIM, OUTPUT_DIM, NUM_LAYERS = 16, 16, 32, 8, 2

    key = jax.random.PRNGKey(0)
    k_adj, k_x, k_p = jax.random.split(key, 3)

    a_norm, a_herm_r, a_herm_i = build_adjacency(k_adj, N)
    x = jax.random.normal(k_x, (N, INPUT_DIM), jnp.float32)
    params = init_params(k_p, INPUT_DIM, HIDDEN_DIM, OUTPUT_DIM, NUM_LAYERS)

    fwd = jax.jit(orthogonal_gcn_forward)
    out = jax.block_until_ready(fwd(params, a_norm, a_herm_r, a_herm_i, x))

    ref = reference_forward(params, a_norm, a_herm_r, a_herm_i, x)
    assert out.shape == (N, OUTPUT_DIM)
    # bf16 MXU inputs + per-layer bf16 activation re-quantization -> 2e-2 tol.
    assert jnp.allclose(out, ref, atol=2e-2, rtol=2e-2), "mismatch vs reference"

    print("KERNEL_OK")
</pallas_src>

<mosaic_0001>
module attributes {stable_mosaic.version = 11 : i64} {
  func.func @_fused_ogcn_kernel(%arg0: memref<16x16xbf16, #tpu.memory_space<vmem>>, %arg1: memref<16x16xbf16, #tpu.memory_space<vmem>>, %arg2: memref<16x16xbf16, #tpu.memory_space<vmem>>, %arg3: memref<16x16xbf16, #tpu.memory_space<vmem>>, %arg4: memref<16x64xbf16, #tpu.memory_space<vmem>>, %arg5: memref<2x64x64xbf16, #tpu.memory_space<vmem>>, %arg6: memref<32x128xbf16, #tpu.memory_space<vmem>>, %arg7: memref<1x128xf32, #tpu.memory_space<vmem>>, %arg8: memref<16x128xf32, #tpu.memory_space<vmem>>, %arg9: memref<16x64xbf16, #tpu.memory_space<vmem>>) attributes {dimension_semantics = [], scalar_prefetch = 0 : i64, scratch_operands = 1 : i64, tpu.core_type = #tpu.core_type<tc>} {
    %c0 = arith.constant 0 : index
    %c0_0 = arith.constant 0 : index
    %0 = vector.load %arg3[%c0, %c0_0] : memref<16x16xbf16, #tpu.memory_space<vmem>>, vector<16x16xbf16>
    %c0_1 = arith.constant 0 : index
    %c0_2 = arith.constant 0 : index
    %1 = vector.load %arg4[%c0_1, %c0_2] : memref<16x64xbf16, #tpu.memory_space<vmem>>, vector<16x64xbf16>
    %cst = arith.constant dense<0.000000e+00> : vector<16x64xf32>
    %2 = tpu.matmul %0, %1, %cst {dimension_numbers = #tpu.dot_dimension_numbers<[1], [0], [0], [1], [0, 0, 1, 1], [], []>} : vector<16x16xbf16>, vector<16x64xbf16>, vector<16x64xf32> -> vector<16x64xf32>
    %c0_3 = arith.constant 0 : index
    %c0_4 = arith.constant 0 : index
    %3 = vector.load %arg0[%c0_3, %c0_4] : memref<16x16xbf16, #tpu.memory_space<vmem>>, vector<16x16xbf16>
    %4 = arith.truncf %2 : vector<16x64xf32> to vector<16x64xbf16>
    %cst_5 = arith.constant dense<0.000000e+00> : vector<16x64xf32>
    %5 = tpu.matmul %3, %4, %cst_5 {dimension_numbers = #tpu.dot_dimension_numbers<[1], [0], [0], [1], [0, 0, 1, 1], [], []>} : vector<16x16xbf16>, vector<16x64xbf16>, vector<16x64xf32> -> vector<16x64xf32>
    %6 = arith.truncf %5 : vector<16x64xf32> to vector<16x64xbf16>
    %c0_6 = arith.constant 0 : index
    %c0_7 = arith.constant 0 : index
    %7 = vector.load %arg9[%c0_6, %c0_7] : memref<16x64xbf16, #tpu.memory_space<vmem>>, vector<16x64xbf16>
    tpu.vector_store %arg9[%c0_6, %c0_7], %6 {strides = array<i32>} : memref<16x64xbf16, #tpu.memory_space<vmem>>, vector<16x64xbf16>,
    %c0_8 = arith.constant 0 : index
    %c0_9 = arith.constant 0 : index
    %8 = vector.load %arg1[%c0_8, %c0_9] : memref<16x16xbf16, #tpu.memory_space<vmem>>, vector<16x16xbf16>
    %c0_10 = arith.constant 0 : index
    %c0_11 = arith.constant 0 : index
    %9 = vector.load %arg2[%c0_10, %c0_11] : memref<16x16xbf16, #tpu.memory_space<vmem>>, vector<16x16xbf16>
    %c0_i32 = arith.constant 0 : i32
    %c0_12 = arith.constant 0 : index
    %c0_13 = arith.constant 0 : index
    %10 = vector.load %arg9[%c0_12, %c0_13] : memref<16x64xbf16, #tpu.memory_space<vmem>>, vector<16x64xbf16>
    %11 = arith.index_cast %c0_i32 : i32 to index
    %c0_14 = arith.constant 0 : index
    %c0_15 = arith.constant 0 : index
    %12 = vector.load %arg5[%11, %c0_14, %c0_15] : memref<2x64x64xbf16, #tpu.memory_space<vmem>>, vector<1x64x64xbf16>
    %13 = vector.shape_cast %12 : vector<1x64x64xbf16> to vector<64x64xbf16>
    %cst_16 = arith.constant dense<0.000000e+00> : vector<16x64xf32>
    %14 = tpu.matmul %10, %13, %cst_16 {dimension_numbers = #tpu.dot_dimension_numbers<[1], [0], [0], [1], [0, 0, 1, 1], [], []>} : vector<16x64xbf16>, vector<64x64xbf16>, vector<16x64xf32> -> vector<16x64xf32>
    %15 = arith.truncf %14 : vector<16x64xf32> to vector<16x64xbf16>
    %cst_17 = arith.constant dense<0.000000e+00> : vector<16x64xf32>
    %16 = tpu.matmul %8, %15, %cst_17 {dimension_numbers = #tpu.dot_dimension_numbers<[1], [0], [0], [1], [0, 0, 1, 1], [], []>} : vector<16x16xbf16>, vector<16x64xbf16>, vector<16x64xf32> -> vector<16x64xf32>
    %cst_18 = arith.constant dense<0.000000e+00> : vector<16x64xf32>
    %17 = tpu.matmul %9, %15, %cst_18 {dimension_numbers = #tpu.dot_dimension_numbers<[1], [0], [0], [1], [0, 0, 1, 1], [], []>} : vector<16x16xbf16>, vector<16x64xbf16>, vector<16x64xf32> -> vector<16x64xf32>
    %18 = vector.extract_strided_slice %16 {offsets = [0, 0], sizes = [16, 32], strides = [1, 1]} : vector<16x64xf32> to vector<16x32xf32>
    %19 = vector.extract_strided_slice %17 {offsets = [0, 32], sizes = [16, 32], strides = [1, 1]} : vector<16x64xf32> to vector<16x32xf32>
    %20 = arith.subf %18, %19 : vector<16x32xf32>
    %21 = vector.extract_strided_slice %16 {offsets = [0, 32], sizes = [16, 32], strides = [1, 1]} : vector<16x64xf32> to vector<16x32xf32>
    %22 = vector.extract_strided_slice %17 {offsets = [0, 0], sizes = [16, 32], strides = [1, 1]} : vector<16x64xf32> to vector<16x32xf32>
    %23 = arith.addf %21, %22 : vector<16x32xf32>
    %24 = tpu.concatenate %20, %23 in 1 : vector<16x32xf32>, vector<16x32xf32> -> vector<16x64xf32>
    %25 = arith.truncf %24 : vector<16x64xf32> to vector<16x64xbf16>
    %c0_19 = arith.constant 0 : index
    %c0_20 = arith.constant 0 : index
    %26 = vector.load %arg9[%c0_19, %c0_20] : memref<16x64xbf16, #tpu.memory_space<vmem>>, vector<16x64xbf16>
    tpu.vector_store %arg9[%c0_19, %c0_20], %25 {strides = array<i32>} : memref<16x64xbf16, #tpu.memory_space<vmem>>, vector<16x64xbf16>,
    %c1_i32 = arith.constant 1 : i32
    %c0_21 = arith.constant 0 : index
    %c0_22 = arith.constant 0 : index
    %27 = vector.load %arg9[%c0_21, %c0_22] : memref<16x64xbf16, #tpu.memory_space<vmem>>, vector<16x64xbf16>
    %28 = arith.index_cast %c1_i32 : i32 to index
    %c0_23 = arith.constant 0 : index
    %c0_24 = arith.constant 0 : index
    %29 = vector.load %arg5[%28, %c0_23, %c0_24] : memref<2x64x64xbf16, #tpu.memory_space<vmem>>, vector<1x64x64xbf16>
    %30 = vector.shape_cast %29 : vector<1x64x64xbf16> to vector<64x64xbf16>
    %cst_25 = arith.constant dense<0.000000e+00> : vector<16x64xf32>
    %31 = tpu.matmul %27, %30, %cst_25 {dimension_numbers = #tpu.dot_dimension_numbers<[1], [0], [0], [1], [0, 0, 1, 1], [], []>} : vector<16x64xbf16>, vector<64x64xbf16>, vector<16x64xf32> -> vector<16x64xf32>
    %32 = arith.truncf %31 : vector<16x64xf32> to vector<16x64xbf16>
    %cst_26 = arith.constant dense<0.000000e+00> : vector<16x64xf32>
    %33 = tpu.matmul %8, %32, %cst_26 {dimension_numbers = #tpu.dot_dimension_numbers<[1], [0], [0], [1], [0, 0, 1, 1], [], []>} : vector<16x16xbf16>, vector<16x64xbf16>, vector<16x64xf32> -> vector<16x64xf32>
    %cst_27 = arith.constant dense<0.000000e+00> : vector<16x64xf32>
    %34 = tpu.matmul %9, %32, %cst_27 {dimension_numbers = #tpu.dot_dimension_numbers<[1], [0], [0], [1], [0, 0, 1, 1], [], []>} : vector<16x16xbf16>, vector<16x64xbf16>, vector<16x64xf32> -> vector<16x64xf32>
    %35 = vector.extract_strided_slice %33 {offsets = [0, 0], sizes = [16, 32], strides = [1, 1]} : vector<16x64xf32> to vector<16x32xf32>
    %36 = vector.extract_strided_slice %34 {offsets = [0, 32], sizes = [16, 32], strides = [1, 1]} : vector<16x64xf32> to vector<16x32xf32>
    %37 = arith.subf %35, %36 : vector<16x32xf32>
    %38 = vector.extract_strided_slice %33 {offsets = [0, 32], sizes = [16, 32], strides = [1, 1]} : vector<16x64xf32> to vector<16x32xf32>
    %39 = vector.extract_strided_slice %34 {offsets = [0, 0], sizes = [16, 32], strides = [1, 1]} : vector<16x64xf32> to vector<16x32xf32>
    %40 = arith.addf %38, %39 : vector<16x32xf32>
    %41 = tpu.concatenate %37, %40 in 1 : vector<16x32xf32>, vector<16x32xf32> -> vector<16x64xf32>
    %42 = arith.truncf %41 : vector<16x64xf32> to vector<16x64xbf16>
    %c0_28 = arith.constant 0 : index
    %c0_29 = arith.constant 0 : index
    %43 = vector.load %arg9[%c0_28, %c0_29] : memref<16x64xbf16, #tpu.memory_space<vmem>>, vector<16x64xbf16>
    tpu.vector_store %arg9[%c0_28, %c0_29], %42 {strides = array<i32>} : memref<16x64xbf16, #tpu.memory_space<vmem>>, vector<16x64xbf16>,
    %c2_i32 = arith.constant 2 : i32
    %c0_30 = arith.constant 0 : index
    %c0_31 = arith.constant 0 : index
    %44 = vector.load %arg9[%c0_30, %c0_31] : memref<16x64xbf16, #tpu.memory_space<vmem>>, vector<16x64xbf16>
    %45 = vector.extract_strided_slice %44 {offsets = [0, 0], sizes = [16, 32], strides = [1, 1]} : vector<16x64xbf16> to vector<16x32xbf16>
    %c0_32 = arith.constant 0 : index
    %c0_33 = arith.constant 0 : index
    %46 = vector.load %arg6[%c0_32, %c0_33] : memref<32x128xbf16, #tpu.memory_space<vmem>>, vector<32x128xbf16>
    %cst_34 = arith.constant dense<0.000000e+00> : vector<16x128xf32>
    %47 = tpu.matmul %45, %46, %cst_34 {dimension_numbers = #tpu.dot_dimension_numbers<[1], [0], [0], [1], [0, 0, 1, 1], [], []>} : vector<16x32xbf16>, vector<32x128xbf16>, vector<16x128xf32> -> vector<16x128xf32>
    %c0_35 = arith.constant 0 : index
    %c0_36 = arith.constant 0 : index
    %48 = vector.load %arg7[%c0_35, %c0_36] : memref<1x128xf32, #tpu.memory_space<vmem>>, vector<1x128xf32>
    %49 = vector.broadcast %48 : vector<1x128xf32> to vector<16x128xf32>
    %50 = arith.addf %47, %49 : vector<16x128xf32>
    %c0_37 = arith.constant 0 : index
    %c0_38 = arith.constant 0 : index
    %51 = vector.load %arg8[%c0_37, %c0_38] : memref<16x128xf32, #tpu.memory_space<vmem>>, vector<16x128xf32>
    tpu.vector_store %arg8[%c0_37, %c0_38], %50 {strides = array<i32>} : memref<16x128xf32, #tpu.memory_space<vmem>>, vector<16x128xf32>,
    return
  }
}

</mosaic_0001>

<llo_original>
// kernel: orthogonal_gcn_forward.1
$region0: #{orthogonal_gcn_forward.1}
  #allocation0 [shape = 'u32[]', space=smem, size = 0x4, offset = 0x4, fixed_abs, tag = 'smem constant byte address 0x4 - core index']
  #allocation1 [shape = 'u32[144,128]{1,0:T(1,128)}', space=vmem, size = 0x12000, scoped, tag = 'internal scratch']
  #allocation2 [shape = 'bf16[16,64]{1,0:T(8,128)(2,1)}', space=vmem, size = 0x1000, scoped, tag = 'scratch operand']
  %s0 = inlined_call_operand.vmem [shape: bf16[16,16], index: 0, kind: input, shape index: {}]
  %s1 = inlined_call_operand.vmem [shape: bf16[16,16], index: 1, kind: input, shape index: {}]
  %s2 = inlined_call_operand.vmem [shape: bf16[16,16], index: 2, kind: input, shape index: {}]
  %s3 = inlined_call_operand.vmem [shape: bf16[16,16], index: 3, kind: input, shape index: {}]
  %s4 = inlined_call_operand.vmem [shape: bf16[16,64], index: 4, kind: input, shape index: {}]
  %s5 = inlined_call_operand.vmem [shape: bf16[2,64,64], index: 5, kind: input, shape index: {}]
  %s6 = inlined_call_operand.vmem [shape: bf16[32,128], index: 6, kind: input, shape index: {}]
  %s7 = inlined_call_operand.vmem [shape: f32[1,128], index: 7, kind: input, shape index: {}]
  %s8 = inlined_call_operand.vmem [shape: f32[16,128], index: 8, kind: output, shape index: {}]
  %s9 = sld [smem:[#allocation0]]
  $region42: #{orthogonal_gcn_forward.1} parent=0
    _
  %s11 = ssub.s32 1, %s9
  %s12 = scalar_select 0, %s11, %s9
  // Predicated region
  $region2: #{orthogonal_gcn_forward.1} parent=0 // pred_check
    _
  $region3: #{orthogonal_gcn_forward.1} parent=0 // pred_check_branch
    %14 = sbr.rel (0) target = $region5
  $region4: #{orthogonal_gcn_forward.1} parent=0 // pred_region
    _
  $region5: #{orthogonal_gcn_forward.1} parent=0 // pred_fallthru
    _
  // Predicated region
  $region6: #{orthogonal_gcn_forward.1} parent=0 // pred_check
    _
  $region7: #{orthogonal_gcn_forward.1} parent=0 // pred_check_branch
    %16 = sbr.rel (0) target = $region9
  $region8: #{orthogonal_gcn_forward.1} parent=0 // pred_region
    _
  $region9: #{orthogonal_gcn_forward.1} parent=0 // pred_fallthru
    _
  // Predicated region
  $region10: #{orthogonal_gcn_forward.1} parent=0 // pred_check
    _
  $region11: #{orthogonal_gcn_forward.1} parent=0 // pred_check_branch
    %18 = sbr.rel (0) target = $region13
  $region12: #{orthogonal_gcn_forward.1} parent=0 // pred_region
    _
  $region13: #{orthogonal_gcn_forward.1} parent=0 // pred_fallthru
    _
  // Predicated region
  $region14: #{orthogonal_gcn_forward.1} parent=0 // pred_check
    _
  $region15: #{orthogonal_gcn_forward.1} parent=0 // pred_check_branch
    %20 = sbr.rel (0) target = $region17
  $region16: #{orthogonal_gcn_forward.1} parent=0 // pred_region
    _
  $region17: #{orthogonal_gcn_forward.1} parent=0 // pred_fallthru
    _
  // Predicated region
  $region18: #{orthogonal_gcn_forward.1} parent=0 // pred_check
    _
  $region19: #{orthogonal_gcn_forward.1} parent=0 // pred_check_branch
    %22 = sbr.rel (0) target = $region21
  $region20: #{orthogonal_gcn_forward.1} parent=0 // pred_region
    _
  $region21: #{orthogonal_gcn_forward.1} parent=0 // pred_fallthru
    _
  // Predicated region
  $region22: #{orthogonal_gcn_forward.1} parent=0 // pred_check
    _
  $region23: #{orthogonal_gcn_forward.1} parent=0 // pred_check_branch
    %24 = sbr.rel (0) target = $region25
  $region24: #{orthogonal_gcn_forward.1} parent=0 // pred_region
    _
  $region25: #{orthogonal_gcn_forward.1} parent=0 // pred_fallthru
    _
  // Predicated region
  $region26: #{orthogonal_gcn_forward.1} parent=0 // pred_check
    _
  $region27: #{orthogonal_gcn_forward.1} parent=0 // pred_check_branch
    %26 = sbr.rel (0) target = $region29
  $region28: #{orthogonal_gcn_forward.1} parent=0 // pred_region
    _
  $region29: #{orthogonal_gcn_forward.1} parent=0 // pred_fallthru
    _
  // Predicated region
  $region30: #{orthogonal_gcn_forward.1} parent=0 // pred_check
    _
  $region31: #{orthogonal_gcn_forward.1} parent=0 // pred_check_branch
    %28 = sbr.rel (0) target = $region33
  $region32: #{orthogonal_gcn_forward.1} parent=0 // pred_region
    _
  $region33: #{orthogonal_gcn_forward.1} parent=0 // pred_fallthru
    _
  %v30 = vld [vmem:[%s3] sm:$0xf]
  %v31 = vld [vmem:[%s3 + $0x4] sm:$0xf]
  %v32 = vld [vmem:[%s4] sm:$0xf]
  %v33 = vld [vmem:[%s4 + $0x4] sm:$0xf]
  %v36 = vunpack.c.l.b16 %v30
  %v37 = vunpack.c.l.b16 %v31
  %v38 = vpack.c.b16 %v37, %v36
  %v41 = vunpack.c.l.b16 %v32
  %v42 = vunpack.c.l.b16 %v33
  %v43 = vpack.c.b16 %v42, %v41
  %vm45 = vcmask 130048
  %v47 = vsel %vm45, %v38, 0
  %49 = vmatprep.subr.bf16.mxu0 0
  %50 = vmatpush1.bf16.msra.mxu0 0
  %51 = vmatprep.subr.bf16.mxu0 0
  %52 = vmatpush1.bf16.msra.mxu0 0
  %53 = vmatprep.subr.bf16.mxu0 0
  %54 = vmatpush1.bf16.msra.mxu0 0
  %55 = vmatprep.subr.bf16.mxu0 0
  %56 = vmatpush1.bf16.msra.mxu0 0
  %57 = vmatprep.subr.bf16.mxu0 0
  %58 = vmatpush1.bf16.msra.mxu0 0
  %59 = vmatprep.subr.bf16.mxu0 0
  %60 = vmatpush1.bf16.msra.mxu0 0
  %61 = vmatprep.subr.bf16.mxu0 0
  %62 = vmatpush1.bf16.msra.mxu0 0
  %63 = vmatprep.subr.bf16.mxu0 0
  %64 = vmatpush1.bf16.msra.mxu0 %v43
  %65 = vmatprep.subr.bf16.mxu0 0
  %66 = vmatpush2.bf16.msra.mxu0 0
  %67 = vmatprep.subr.bf16.mxu0 0
  %68 = vmatpush2.bf16.msra.mxu0 0
  %69 = vmatprep.subr.bf16.mxu0 0
  %70 = vmatpush2.bf16.msra.mxu0 0
  %71 = vmatprep.subr.bf16.mxu0 0
  %72 = vmatpush2.bf16.msra.mxu0 0
  %73 = vmatprep.subr.bf16.mxu0 0
  %74 = vmatpush2.bf16.msra.mxu0 0
  %75 = vmatprep.subr.bf16.mxu0 0
  %76 = vmatpush2.bf16.msra.mxu0 0
  %77 = vmatprep.subr.bf16.mxu0 0
  %78 = vmatpush2.bf16.msra.mxu0 0
  %79 = vmatprep.subr.bf16.mxu0 0
  %80 = vmatpush2.bf16.msra.mxu0 0
  %81 = vmatprep.mubr.bf16.mxu0 0
  %82 = vmatmul.mubr.bf16.gmra.mxu0 %v47
  %v83 = vpop.f32.mrf.mxu0
  %v84 = vadd.f32 0.0, %v83
  %v85 = vpop.f32.mrf.mxu0
  %v86 = vpop.f32.mrf.mxu0
  %v87 = vadd.f32 0.0, %v86
  %v88 = vpop.f32.mrf.mxu0
  %89 = vdwg.mxu0
  %v90 = vld [vmem:[%s0] sm:$0xf]
  %v91 = vld [vmem:[%s0 + $0x4] sm:$0xf]
  %v92 = vpack.c.bf16 %v87, %v84
  %v95 = vunpack.c.l.b16 %v90
  %v96 = vunpack.c.l.b16 %v91
  %v97 = vpack.c.b16 %v96, %v95
  %v99 = vsel %vm45, %v97, 0
  %101 = vmatprep.subr.bf16.mxu0 0
  %102 = vmatpush1.bf16.msra.mxu0 0
  %103 = vmatprep.subr.bf16.mxu0 0
  %104 = vmatpush1.bf16.msra.mxu0 0
  %105 = vmatprep.subr.bf16.mxu0 0
  %106 = vmatpush1.bf16.msra.mxu0 0
  %107 = vmatprep.subr.bf16.mxu0 0
  %108 = vmatpush1.bf16.msra.mxu0 0
  %109 = vmatprep.subr.bf16.mxu0 0
  %110 = vmatpush1.bf16.msra.mxu0 0
  %111 = vmatprep.subr.bf16.mxu0 0
  %112 = vmatpush1.bf16.msra.mxu0 0
  %113 = vmatprep.subr.bf16.mxu0 0
  %114 = vmatpush1.bf16.msra.mxu0 0
  %115 = vmatprep.subr.bf16.mxu0 0
  %116 = vmatpush1.bf16.msra.mxu0 %v92
  %117 = vmatprep.subr.bf16.mxu0 0
  %118 = vmatpush2.bf16.msra.mxu0 0
  %119 = vmatprep.subr.bf16.mxu0 0
  %120 = vmatpush2.bf16.msra.mxu0 0
  %121 = vmatprep.subr.bf16.mxu0 0
  %122 = vmatpush2.bf16.msra.mxu0 0
  %123 = vmatprep.subr.bf16.mxu0 0
  %124 = vmatpush2.bf16.msra.mxu0 0
  %125 = vmatprep.subr.bf16.mxu0 0
  %126 = vmatpush2.bf16.msra.mxu0 0
  %127 = vmatprep.subr.bf16.mxu0 0
  %128 = vmatpush2.bf16.msra.mxu0 0
  %129 = vmatprep.subr.bf16.mxu0 0
  %130 = vmatpush2.bf16.msra.mxu0 0
  %131 = vmatprep.subr.bf16.mxu0 0
  %132 = vmatpush2.bf16.msra.mxu0 0
  %133 = vmatprep.mubr.bf16.mxu0 0
  %134 = vmatmul.mubr.bf16.gmra.mxu0 %v99
  %v135 = vpop.f32.mrf.mxu0
  %v136 = vadd.f32 0.0, %v135
  %v137 = vpop.f32.mrf.mxu0
  %v138 = vpop.f32.mrf.mxu0
  %v139 = vadd.f32 0.0, %v138
  %v140 = vpop.f32.mrf.mxu0
  %141 = vdwg.mxu0
  %v142 = vpack.c.bf16 %v139, %v136
  %v144 = vunpack.c.l.b16 %v142
  %v145 = vunpack.c.h.b16 %v142
  %v146 = vpack.c.b16 %v144, %v144
  %v147 = vpack.c.b16 %v145, %v145
  %vm150 = vcmask 519168
  %151 = vst.msk [vmem:[#allocation2] sm:$0xf] %vm150, %v146
  %152 = vst.msk [vmem:[#allocation2 + $0x4] sm:$0xf] %vm150, %v147
  %v153 = vld [vmem:[%s1] sm:$0xf]
  %v154 = vld [vmem:[%s1 + $0x4] sm:$0xf]
  %v155 = vld [vmem:[%s2] sm:$0xf]
  %v156 = vld [vmem:[%s2 + $0x4] sm:$0xf]
  %v157 = vld [vmem:[#allocation2] sm:$0xf]
  %v158 = vld [vmem:[#allocation2 + $0x4] sm:$0xf]
  %v159 = vld [vmem:[%s5] sm:$0xf]
  %v160 = vld [vmem:[%s5 + $0x4] sm:$0xf]
  %v161 = vld [vmem:[%s5 + $0x8] sm:$0xf]
  %v162 = vld [vmem:[%s5 + $0xc] sm:$0xf]
  %v163 = vld [vmem:[%s5 + $0x10] sm:$0xf]
  %v164 = vld [vmem:[%s5 + $0x14] sm:$0xf]
  %v165 = vld [vmem:[%s5 + $0x18] sm:$0xf]
  %v166 = vld [vmem:[%s5 + $0x1c] sm:$0xf]
  %v169 = vunpack.c.l.b16 %v157
  %v170 = vunpack.c.l.b16 %v158
  %v171 = vpack.c.b16 %v170, %v169
  %v180 = vunpack.c.l.b16 %v159
  %v181 = vunpack.c.l.b16 %v160
  %v182 = vunpack.c.l.b16 %v161
  %v183 = vunpack.c.l.b16 %v162
  %v184 = vunpack.c.l.b16 %v163
  %v185 = vunpack.c.l.b16 %v164
  %v186 = vunpack.c.l.b16 %v165
  %v187 = vunpack.c.l.b16 %v166
  %v188 = vpack.c.b16 %v181, %v180
  %v189 = vpack.c.b16 %v183, %v182
  %v190 = vpack.c.b16 %v185, %v184
  %v191 = vpack.c.b16 %v187, %v186
  %vm196 = vcmask 523264
  %v198 = vsel %vm196, %v171, 0
  %200 = vmatprep.subr.bf16.mxu0 0
  %201 = vmatpush1.bf16.msra.mxu0 0
  %202 = vmatprep.subr.bf16.mxu0 0
  %203 = vmatpush1.bf16.msra.mxu0 0
  %204 = vmatprep.subr.bf16.mxu0 0
  %205 = vmatpush1.bf16.msra.mxu0 0
  %206 = vmatprep.subr.bf16.mxu0 0
  %207 = vmatpush1.bf16.msra.mxu0 0
  %208 = vmatprep.subr.bf16.mxu0 0
  %209 = vmatpush1.bf16.msra.mxu0 %v191
  %210 = vmatprep.subr.bf16.mxu0 0
  %211 = vmatpush1.bf16.msra.mxu0 %v190
  %212 = vmatprep.subr.bf16.mxu0 0
  %213 = vmatpush1.bf16.msra.mxu0 %v189
  %214 = vmatprep.subr.bf16.mxu0 0
  %215 = vmatpush1.bf16.msra.mxu0 %v188
  %216 = vmatprep.subr.bf16.mxu0 0
  %217 = vmatpush2.bf16.msra.mxu0 0
  %218 = vmatprep.subr.bf16.mxu0 0
  %219 = vmatpush2.bf16.msra.mxu0 0
  %220 = vmatprep.subr.bf16.mxu0 0
  %221 = vmatpush2.bf16.msra.mxu0 0
  %222 = vmatprep.subr.bf16.mxu0 0
  %223 = vmatpush2.bf16.msra.mxu0 0
  %224 = vmatprep.subr.bf16.mxu0 0
  %225 = vmatpush2.bf16.msra.mxu0 0
  %226 = vmatprep.subr.bf16.mxu0 0
  %227 = vmatpush2.bf16.msra.mxu0 0
  %228 = vmatprep.subr.bf16.mxu0 0
  %229 = vmatpush2.bf16.msra.mxu0 0
  %230 = vmatprep.subr.bf16.mxu0 0
  %231 = vmatpush2.bf16.msra.mxu0 0
  %232 = vmatprep.mubr.bf16.mxu0 0
  %233 = vmatmul.mubr.bf16.gmra.mxu0 %v198
  %v234 = vpop.f32.mrf.mxu0
  %v235 = vadd.f32 0.0, %v234
  %v236 = vpop.f32.mrf.mxu0
  %v237 = vpop.f32.mrf.mxu0
  %v238 = vadd.f32 0.0, %v237
  %v239 = vpop.f32.mrf.mxu0
  %240 = vdwg.mxu0
  %v241 = vpack.c.bf16 %v238, %v235
  %v244 = vunpack.c.l.b16 %v153
  %v245 = vunpack.c.l.b16 %v154
  %v246 = vpack.c.b16 %v245, %v244
  %v248 = vsel %vm45, %v246, 0
  %250 = vmatprep.subr.bf16.mxu0 0
  %251 = vmatpush1.bf16.msra.mxu0 0
  %252 = vmatprep.subr.bf16.mxu0 0
  %253 = vmatpush1.bf16.msra.mxu0 0
  %254 = vmatprep.subr.bf16.mxu0 0
  %255 = vmatpush1.bf16.msra.mxu0 0
  %256 = vmatprep.subr.bf16.mxu0 0
  %257 = vmatpush1.bf16.msra.mxu0 0
  %258 = vmatprep.subr.bf16.mxu0 0
  %259 = vmatpush1.bf16.msra.mxu0 0
  %260 = vmatprep.subr.bf16.mxu0 0
  %261 = vmatpush1.bf16.msra.mxu0 0
  %262 = vmatprep.subr.bf16.mxu0 0
  %263 = vmatpush1.bf16.msra.mxu0 0
  %264 = vmatprep.subr.bf16.mxu0 0
  %265 = vmatpush1.bf16.msra.mxu0 %v241
  %266 = vmatprep.subr.bf16.mxu0 0
  %267 = vmatpush2.bf16.msra.mxu0 0
  %268 = vmatprep.subr.bf16.mxu0 0
  %269 = vmatpush2.bf16.msra.mxu0 0
  %270 = vmatprep.subr.bf16.mxu0 0
  %271 = vmatpush2.bf16.msra.mxu0 0
  %272 = vmatprep.subr.bf16.mxu0 0
  %273 = vmatpush2.bf16.msra.mxu0 0
  %274 = vmatprep.subr.bf16.mxu0 0
  %275 = vmatpush2.bf16.msra.mxu0 0
  %276 = vmatprep.subr.bf16.mxu0 0
  %277 = vmatpush2.bf16.msra.mxu0 0
  %278 = vmatprep.subr.bf16.mxu0 0
  %279 = vmatpush2.bf16.msra.mxu0 0
  %280 = vmatprep.subr.bf16.mxu0 0
  %281 = vmatpush2.bf16.msra.mxu0 0
  %282 = vmatprep.mubr.bf16.mxu0 0
  %283 = vmatmul.mubr.bf16.gmra.mxu0 %v248
  %v284 = vpop.f32.mrf.mxu0
  %v285 = vadd.f32 0.0, %v284
  %v286 = vpop.f32.mrf.mxu0
  %v287 = vpop.f32.mrf.mxu0
  %v288 = vadd.f32 0.0, %v287
  %v289 = vpop.f32.mrf.mxu0
  %290 = vdwg.mxu0
  %v293 = vunpack.c.l.b16 %v155
  %v294 = vunpack.c.l.b16 %v156
  %v295 = vpack.c.b16 %v294, %v293
  %v297 = vsel %vm45, %v295, 0
  %299 = vmatprep.subr.bf16.mxu0 0
  %300 = vmatpush1.bf16.msra.mxu0 0
  %301 = vmatprep.subr.bf16.mxu0 0
  %302 = vmatpush1.bf16.msra.mxu0 0
  %303 = vmatprep.subr.bf16.mxu0 0
  %304 = vmatpush1.bf16.msra.mxu0 0
  %305 = vmatprep.subr.bf16.mxu0 0
  %306 = vmatpush1.bf16.msra.mxu0 0
  %307 = vmatprep.subr.bf16.mxu0 0
  %308 = vmatpush1.bf16.msra.mxu0 0
  %309 = vmatprep.subr.bf16.mxu0 0
  %310 = vmatpush1.bf16.msra.mxu0 0
  %311 = vmatprep.subr.bf16.mxu0 0
  %312 = vmatpush1.bf16.msra.mxu0 0
  %313 = vmatprep.subr.bf16.mxu0 0
  %314 = vmatpush1.bf16.msra.mxu0 %v241
  %315 = vmatprep.subr.bf16.mxu0 0
  %316 = vmatpush2.bf16.msra.mxu0 0
  %317 = vmatprep.subr.bf16.mxu0 0
  %318 = vmatpush2.bf16.msra.mxu0 0
  %319 = vmatprep.subr.bf16.mxu0 0
  %320 = vmatpush2.bf16.msra.mxu0 0
  %321 = vmatprep.subr.bf16.mxu0 0
  %322 = vmatpush2.bf16.msra.mxu0 0
  %323 = vmatprep.subr.bf16.mxu0 0
  %324 = vmatpush2.bf16.msra.mxu0 0
  %325 = vmatprep.subr.bf16.mxu0 0
  %326 = vmatpush2.bf16.msra.mxu0 0
  %327 = vmatprep.subr.bf16.mxu0 0
  %328 = vmatpush2.bf16.msra.mxu0 0
  %329 = vmatprep.subr.bf16.mxu0 0
  %330 = vmatpush2.bf16.msra.mxu0 0
  %331 = vmatprep.mubr.bf16.mxu0 0
  %332 = vmatmul.mubr.bf16.gmra.mxu0 %v297
  %v333 = vpop.f32.mrf.mxu0
  %v334 = vadd.f32 0.0, %v333
  %v335 = vpop.f32.mrf.mxu0
  %v336 = vpop.f32.mrf.mxu0
  %v337 = vadd.f32 0.0, %v336
  %v338 = vpop.f32.mrf.mxu0
  %339 = vdwg.mxu0
  %342 = vrot.lane.b32.xlu0 %v334, 96
  %v343 = vpop.permute.xlu0 %342
  %344 = vrot.lane.b32.xlu0 %v337, 96
  %v345 = vpop.permute.xlu0 %344
  %v348 = vsub.f32 %v285, %v343
  %v349 = vsub.f32 %v288, %v345
  %350 = vrot.lane.b32.xlu0 %v334, 32
  %v351 = vpop.permute.xlu0 %350
  %352 = vrot.lane.b32.xlu0 %v337, 32
  %v353 = vpop.permute.xlu0 %352
  %v356 = vadd.f32 %v285, %v351
  %v357 = vadd.f32 %v288, %v353
  %vm358 = vcmask 261120
  %v359 = vsel %vm358, %v348, %v356
  %v360 = vsel %vm358, %v349, %v357
  %v361 = vpack.c.bf16 %v360, %v359
  %v363 = vunpack.c.l.b16 %v361
  %v364 = vunpack.c.h.b16 %v361
  %v365 = vpack.c.b16 %v363, %v363
  %v366 = vpack.c.b16 %v364, %v364
  %369 = vst.msk [vmem:[#allocation2] sm:$0xf] %vm150, %v365
  %370 = vst.msk [vmem:[#allocation2 + $0x4] sm:$0xf] %vm150, %v366
  %v371 = vld [vmem:[#allocation2] sm:$0xf]
  %v372 = vld [vmem:[#allocation2 + $0x4] sm:$0xf]
  %s373 = scalar_lea.vmem %s5, 32
  %v374 = vld [vmem:[%s373] sm:$0xf]
  %v375 = vld [vmem:[%s373 + $0x4] sm:$0xf]
  %v376 = vld [vmem:[%s373 + $0x8] sm:$0xf]
  %v377 = vld [vmem:[%s373 + $0xc] sm:$0xf]
  %v378 = vld [vmem:[%s373 + $0x10] sm:$0xf]
  %v379 = vld [vmem:[%s373 + $0x14] sm:$0xf]
  %v380 = vld [vmem:[%s373 + $0x18] sm:$0xf]
  %v381 = vld [vmem:[%s373 + $0x1c] sm:$0xf]
  %v384 = vunpack.c.l.b16 %v371
  %v385 = vunpack.c.l.b16 %v372
  %v386 = vpack.c.b16 %v385, %v384
  %v395 = vunpack.c.l.b16 %v374
  %v396 = vunpack.c.l.b16 %v375
  %v397 = vunpack.c.l.b16 %v376
  %v398 = vunpack.c.l.b16 %v377
  %v399 = vunpack.c.l.b16 %v378
  %v400 = vunpack.c.l.b16 %v379
  %v401 = vunpack.c.l.b16 %v380
  %v402 = vunpack.c.l.b16 %v381
  %v403 = vpack.c.b16 %v396, %v395
  %v404 = vpack.c.b16 %v398, %v397
  %v405 = vpack.c.b16 %v400, %v399
  %v406 = vpack.c.b16 %v402, %v401
  %v412 = vsel %vm196, %v386, 0
  %414 = vmatprep.subr.bf16.mxu0 0
  %415 = vmatpush1.bf16.msra.mxu0 0
  %416 = vmatprep.subr.bf16.mxu0 0
  %417 = vmatpush1.bf16.msra.mxu0 0
  %418 = vmatprep.subr.bf16.mxu0 0
  %419 = vmatpush1.bf16.msra.mxu0 0
  %420 = vmatprep.subr.bf16.mxu0 0
  %421 = vmatpush1.bf16.msra.mxu0 0
  %422 = vmatprep.subr.bf16.mxu0 0
  %423 = vmatpush1.bf16.msra.mxu0 %v406
  %424 = vmatprep.subr.bf16.mxu0 0
  %425 = vmatpush1.bf16.msra.mxu0 %v405
  %426 = vmatprep.subr.bf16.mxu0 0
  %427 = vmatpush1.bf16.msra.mxu0 %v404
  %428 = vmatprep.subr.bf16.mxu0 0
  %429 = vmatpush1.bf16.msra.mxu0 %v403
  %430 = vmatprep.subr.bf16.mxu0 0
  %431 = vmatpush2.bf16.msra.mxu0 0
  %432 = vmatprep.subr.bf16.mxu0 0
  %433 = vmatpush2.bf16.msra.mxu0 0
  %434 = vmatprep.subr.bf16.mxu0 0
  %435 = vmatpush2.bf16.msra.mxu0 0
  %436 = vmatprep.subr.bf16.mxu0 0
  %437 = vmatpush2.bf16.msra.mxu0 0
  %438 = vmatprep.subr.bf16.mxu0 0
  %439 = vmatpush2.bf16.msra.mxu0 0
  %440 = vmatprep.subr.bf16.mxu0 0
  %441 = vmatpush2.bf16.msra.mxu0 0
  %442 = vmatprep.subr.bf16.mxu0 0
  %443 = vmatpush2.bf16.msra.mxu0 0
  %444 = vmatprep.subr.bf16.mxu0 0
  %445 = vmatpush2.bf16.msra.mxu0 0
  %446 = vmatprep.mubr.bf16.mxu0 0
  %447 = vmatmul.mubr.bf16.gmra.mxu0 %v412
  %v448 = vpop.f32.mrf.mxu0
  %v449 = vadd.f32 0.0, %v448
  %v450 = vpop.f32.mrf.mxu0
  %v451 = vpop.f32.mrf.mxu0
  %v452 = vadd.f32 0.0, %v451
  %v453 = vpop.f32.mrf.mxu0
  %454 = vdwg.mxu0
  %v455 = vpack.c.bf16 %v452, %v449
  %456 = vmatprep.subr.bf16.mxu0 0
  %457 = vmatpush1.bf16.msra.mxu0 0
  %458 = vmatprep.subr.bf16.mxu0 0
  %459 = vmatpush1.bf16.msra.mxu0 0
  %460 = vmatprep.subr.bf16.mxu0 0
  %461 = vmatpush1.bf16.msra.mxu0 0
  %462 = vmatprep.subr.bf16.mxu0 0
  %463 = vmatpush1.bf16.msra.mxu0 0
  %464 = vmatprep.subr.bf16.mxu0 0
  %465 = vmatpush1.bf16.msra.mxu0 0
  %466 = vmatprep.subr.bf16.mxu0 0
  %467 = vmatpush1.bf16.msra.mxu0 0
  %468 = vmatprep.subr.bf16.mxu0 0
  %469 = vmatpush1.bf16.msra.mxu0 0
  %470 = vmatprep.subr.bf16.mxu0 0
  %471 = vmatpush1.bf16.msra.mxu0 %v455
  %472 = vmatprep.subr.bf16.mxu0 0
  %473 = vmatpush2.bf16.msra.mxu0 0
  %474 = vmatprep.subr.bf16.mxu0 0
  %475 = vmatpush2.bf16.msra.mxu0 0
  %476 = vmatprep.subr.bf16.mxu0 0
  %477 = vmatpush2.bf16.msra.mxu0 0
  %478 = vmatprep.subr.bf16.mxu0 0
  %479 = vmatpush2.bf16.msra.mxu0 0
  %480 = vmatprep.subr.bf16.mxu0 0
  %481 = vmatpush2.bf16.msra.mxu0 0
  %482 = vmatprep.subr.bf16.mxu0 0
  %483 = vmatpush2.bf16.msra.mxu0 0
  %484 = vmatprep.subr.bf16.mxu0 0
  %485 = vmatpush2.bf16.msra.mxu0 0
  %486 = vmatprep.subr.bf16.mxu0 0
  %487 = vmatpush2.bf16.msra.mxu0 0
  %488 = vmatprep.mubr.bf16.mxu0 0
  %489 = vmatmul.mubr.bf16.gmra.mxu0 %v248
  %v490 = vpop.f32.mrf.mxu0
  %v491 = vadd.f32 0.0, %v490
  %v492 = vpop.f32.mrf.mxu0
  %v493 = vpop.f32.mrf.mxu0
  %v494 = vadd.f32 0.0, %v493
  %v495 = vpop.f32.mrf.mxu0
  %496 = vdwg.mxu0
  %497 = vmatprep.subr.bf16.mxu0 0
  %498 = vmatpush1.bf16.msra.mxu0 0
  %499 = vmatprep.subr.bf16.mxu0 0
  %500 = vmatpush1.bf16.msra.mxu0 0
  %501 = vmatprep.subr.bf16.mxu0 0
  %502 = vmatpush1.bf16.msra.mxu0 0
  %503 = vmatprep.subr.bf16.mxu0 0
  %504 = vmatpush1.bf16.msra.mxu0 0
  %505 = vmatprep.subr.bf16.mxu0 0
  %506 = vmatpush1.bf16.msra.mxu0 0
  %507 = vmatprep.subr.bf16.mxu0 0
  %508 = vmatpush1.bf16.msra.mxu0 0
  %509 = vmatprep.subr.bf16.mxu0 0
  %510 = vmatpush1.bf16.msra.mxu0 0
  %511 = vmatprep.subr.bf16.mxu0 0
  %512 = vmatpush1.bf16.msra.mxu0 %v455
  %513 = vmatprep.subr.bf16.mxu0 0
  %514 = vmatpush2.bf16.msra.mxu0 0
  %515 = vmatprep.subr.bf16.mxu0 0
  %516 = vmatpush2.bf16.msra.mxu0 0
  %517 = vmatprep.subr.bf16.mxu0 0
  %518 = vmatpush2.bf16.msra.mxu0 0
  %519 = vmatprep.subr.bf16.mxu0 0
  %520 = vmatpush2.bf16.msra.mxu0 0
  %521 = vmatprep.subr.bf16.mxu0 0
  %522 = vmatpush2.bf16.msra.mxu0 0
  %523 = vmatprep.subr.bf16.mxu0 0
  %524 = vmatpush2.bf16.msra.mxu0 0
  %525 = vmatprep.subr.bf16.mxu0 0
  %526 = vmatpush2.bf16.msra.mxu0 0
  %527 = vmatprep.subr.bf16.mxu0 0
  %528 = vmatpush2.bf16.msra.mxu0 0
  %529 = vmatprep.mubr.bf16.mxu0 0
  %530 = vmatmul.mubr.bf16.gmra.mxu0 %v297
  %v531 = vpop.f32.mrf.mxu0
  %v532 = vadd.f32 0.0, %v531
  %v533 = vpop.f32.mrf.mxu0
  %v534 = vpop.f32.mrf.mxu0
  %v535 = vadd.f32 0.0, %v534
  %v536 = vpop.f32.mrf.mxu0
  %537 = vdwg.mxu0
  %540 = vrot.lane.b32.xlu0 %v532, 96
  %v541 = vpop.permute.xlu0 %540
  %542 = vrot.lane.b32.xlu0 %v535, 96
  %v543 = vpop.permute.xlu0 %542
  %v546 = vsub.f32 %v491, %v541
  %v547 = vsub.f32 %v494, %v543
  %548 = vrot.lane.b32.xlu0 %v532, 32
  %v549 = vpop.permute.xlu0 %548
  %550 = vrot.lane.b32.xlu0 %v535, 32
  %v551 = vpop.permute.xlu0 %550
  %v554 = vadd.f32 %v491, %v549
  %v555 = vadd.f32 %v494, %v551
  %v556 = vsel %vm358, %v546, %v554
  %v557 = vsel %vm358, %v547, %v555
  %v558 = vpack.c.bf16 %v557, %v556
  %v560 = vunpack.c.l.b16 %v558
  %v561 = vunpack.c.h.b16 %v558
  %v562 = vpack.c.b16 %v560, %v560
  %v563 = vpack.c.b16 %v561, %v561
  %566 = vst.msk [vmem:[#allocation2] sm:$0xf] %vm150, %v562
  %567 = vst.msk [vmem:[#allocation2 + $0x4] sm:$0xf] %vm150, %v563
  %v568 = vld [vmem:[#allocation2] sm:$0xf]
  %v569 = vld [vmem:[#allocation2 + $0x4] sm:$0xf]
  %v570 = vld [vmem:[%s6] sm:$0xf]
  %v571 = vld [vmem:[%s6 + $0x4] sm:$0xf]
  %v572 = vld [vmem:[%s6 + $0x8] sm:$0xf]
  %v573 = vld [vmem:[%s6 + $0xc] sm:$0xf]
  %v574 = vld [vmem:[%s7] sm:$0x1]
  %v576 = vlaneseq
  %v577 = vshrl.u32 %v576, 7
  %v578 = vsub.s32 0, %v577
  %v579 = vrot.slane %v574, %v578
  %v583 = vunpack.c.l.b16 %v568
  %v584 = vunpack.c.l.b16 %v569
  %v585 = vpack.c.b16 %v584, %v583
  %v590 = vunpack.c.l.b16 %v570
  %v591 = vunpack.c.l.b16 %v571
  %v592 = vunpack.c.l.b16 %v572
  %v593 = vunpack.c.l.b16 %v573
  %v594 = vpack.c.b16 %v591, %v590
  %v595 = vpack.c.b16 %v593, %v592
  %v599 = vsel %vm358, %v585, 0
  %601 = vmatprep.subr.bf16.mxu0 0
  %602 = vmatpush1.bf16.msra.mxu0 0
  %603 = vmatprep.subr.bf16.mxu0 0
  %604 = vmatpush1.bf16.msra.mxu0 0
  %605 = vmatprep.subr.bf16.mxu0 0
  %606 = vmatpush1.bf16.msra.mxu0 0
  %607 = vmatprep.subr.bf16.mxu0 0
  %608 = vmatpush1.bf16.msra.mxu0 0
  %609 = vmatprep.subr.bf16.mxu0 0
  %610 = vmatpush1.bf16.msra.mxu0 0
  %611 = vmatprep.subr.bf16.mxu0 0
  %612 = vmatpush1.bf16.msra.mxu0 0
  %613 = vmatprep.subr.bf16.mxu0 0
  %614 = vmatpush1.bf16.msra.mxu0 %v595
  %615 = vmatprep.subr.bf16.mxu0 0
  %616 = vmatpush1.bf16.msra.mxu0 %v594
  %617 = vmatprep.subr.bf16.mxu0 0
  %618 = vmatpush2.bf16.msra.mxu0 0
  %619 = vmatprep.subr.bf16.mxu0 0
  %620 = vmatpush2.bf16.msra.mxu0 0
  %621 = vmatprep.subr.bf16.mxu0 0
  %622 = vmatpush2.bf16.msra.mxu0 0
  %623 = vmatprep.subr.bf16.mxu0 0
  %624 = vmatpush2.bf16.msra.mxu0 0
  %625 = vmatprep.subr.bf16.mxu0 0
  %626 = vmatpush2.bf16.msra.mxu0 0
  %627 = vmatprep.subr.bf16.mxu0 0
  %628 = vmatpush2.bf16.msra.mxu0 0
  %629 = vmatprep.subr.bf16.mxu0 0
  %630 = vmatpush2.bf16.msra.mxu0 0
  %631 = vmatprep.subr.bf16.mxu0 0
  %632 = vmatpush2.bf16.msra.mxu0 0
  %633 = vmatprep.mubr.bf16.mxu0 0
  %634 = vmatmul.mubr.bf16.gmra.mxu0 %v599
  %v635 = vpop.f32.mrf.mxu0
  %v636 = vadd.f32 %v579, %v635
  %v637 = vpop.f32.mrf.mxu0
  %v638 = vpop.f32.mrf.mxu0
  %v639 = vadd.f32 %v579, %v638
  %v640 = vpop.f32.mrf.mxu0
  %641 = vdwg.mxu0
  %642 = vst [vmem:[%s8] sm:$0xff] %v636
  %643 = vst [vmem:[%s8 + $0x8] sm:$0xff] %v639
  // Predicated region
  $region34: #{orthogonal_gcn_forward.1} parent=0 // pred_check
    _
  $region35: #{orthogonal_gcn_forward.1} parent=0 // pred_check_branch
    %645 = sbr.rel (0) target = $region37
  $region36: #{orthogonal_gcn_forward.1} parent=0 // pred_region
    _
  $region37: #{orthogonal_gcn_forward.1} parent=0 // pred_fallthru
    _
  // Predicated region
  $region38: #{orthogonal_gcn_forward.1} parent=0 // pred_check
    _
  $region39: #{orthogonal_gcn_forward.1} parent=0 // pred_check_branch
    %647 = sbr.rel (0) target = $region41
  $region40: #{orthogonal_gcn_forward.1} parent=0 // pred_region
    _
  $region41: #{orthogonal_gcn_forward.1} parent=0 // pred_fallthru
    _

</llo_original>
